<compile_context>
chip_gen: v6e
topology: v6e:2x2x1
jax: 0.10.0
libtpu: 0.0.40
codegen_flags: <defaults>
</compile_context>

<pallas_src>
import jax
import jax.numpy as jnp
from jax import lax
from jax.experimental import pallas as pl
from jax.experimental.pallas import tpu as pltpu


def _proto_head_kernel(p_ref, pp_ref, x_ref, o_ref):
    # p_ref : (c, n)     prototypes (VMEM-resident; fetched once)
    # pp_ref: (c, 1)     precomputed ||p||^2 (hoisted out of the loop, wrapper-side)
    # x_ref : (1, n, t)  pixel tile: features on sublanes, pixels on lanes
    # o_ref : (1, c, t)  lane-dense negative-distance tile
    x = x_ref[0].astype(jnp.float32)                     # (n, t)
    p = p_ref[...].astype(jnp.float32)                   # (c, n)

    # (c, n) @ (n, t) -> (c, t) on the MXU. Tiny matmul; compute hides under DMA.
    px = lax.dot_general(p, x, (((1,), (0,)), ((), ())),
                         preferred_element_type=jnp.float32)
    xx = jnp.sum(x * x, axis=0, keepdims=True)           # (1, t)
    pp = pp_ref[...].astype(jnp.float32)                 # (c, 1)

    # ||x - p||^2 = ||p||^2 + ||x||^2 - 2 p.x ; clamp cancellation residue before sqrt.
    d2 = jnp.maximum(pp + xx - 2.0 * px, 0.0)
    o_ref[0] = (-jnp.sqrt(d2)).astype(o_ref.dtype)


def _pick_tile(hw: int, max_tile: int = 4096) -> int:
    """Largest legal pixel (lane) tile: full extent if small, else a multiple of 128 dividing hw."""
    if hw <= max_tile:
        return hw                       # full-extent block is always legal
    t = max_tile - (max_tile % 128)
    while t >= 128:
        if hw % t == 0:
            return t
        t -= 128
    return hw                           # fallback: one big full-extent tile


def prototype_head_forward(x_nchw, prototypes, *, max_tile=4096):
    """x_nchw: (B, n, H, W), prototypes: (c, n). Returns (B, c, H, W)."""
    B, n, H, W = x_nchw.shape
    c, n2 = prototypes.shape
    assert n == n2
    HW = H * W
    t_hw = _pick_tile(HW, max_tile)
    assert HW % t_hw == 0

    x_flat = x_nchw.reshape(B, n, HW)                    # free reshape (no relayout)
    pp = jnp.sum(prototypes.astype(jnp.float32) ** 2, axis=-1, keepdims=True)  # (c, 1)

    out_flat = pl.pallas_call(
        _proto_head_kernel,
        out_shape=jax.ShapeDtypeStruct((B, c, HW), x_nchw.dtype),
        grid_spec=pltpu.PrefetchScalarGridSpec(
            num_scalar_prefetch=0,
            grid=(B, HW // t_hw),
            in_specs=[
                pl.BlockSpec((c, n), lambda b, j: (0, 0)),           # prototypes (resident)
                pl.BlockSpec((c, 1), lambda b, j: (0, 0)),           # ||p||^2    (resident)
                pl.BlockSpec((1, n, t_hw), lambda b, j: (b, 0, j)),  # pixel tile (lane-dense)
            ],
            out_specs=pl.BlockSpec((1, c, t_hw), lambda b, j: (b, 0, j)),
        ),
        compiler_params=pltpu.CompilerParams(
            dimension_semantics=("parallel", "parallel")),
    )(prototypes, pp, x_flat)

    return out_flat.reshape(B, c, H, W)                  # free reshape (no relayout)


def _xavier_uniform(key, shape):
    # torch.nn.init.xavier_uniform_ for a 2D (c, n) tensor:
    # fan_in = n, fan_out = c, bound = sqrt(6 / (fan_in + fan_out))
    c, n = shape
    bound = (6.0 / (n + c)) ** 0.5
    return jax.random.uniform(key, shape, jnp.float32, minval=-bound, maxval=bound)


if __name__ == "__main__":
    key = jax.random.PRNGKey(0)
    k_x, k_p = jax.random.split(key)

    B, n, H, W = 2, 32, 16, 16     # num_features = 32
    c = 8                          # num_classes  = 8

    x = jax.random.normal(k_x, (B, n, H, W), jnp.float32)
    prototypes = _xavier_uniform(k_p, (c, n))

    out = prototype_head_forward(x, prototypes)
    out = jax.block_until_ready(out)

    # Pure-JAX reference: exact cdist semantics
    x_nhwc = jnp.transpose(x, (0, 2, 3, 1))                        # (B,H,W,n)
    diff = x_nhwc[..., None, :] - prototypes[None, None, None]     # (B,H,W,c,n)
    ref = -jnp.sqrt(jnp.sum(diff * diff, axis=-1))                 # (B,H,W,c)
    ref = jnp.transpose(ref, (0, 3, 1, 2))                         # (B,c,H,W)

    assert out.shape == (B, c, H, W)
    assert jnp.allclose(out, ref, atol=1e-3, rtol=1e-4)
    print("KERNEL_OK")
</pallas_src>

<mosaic_0001>
module attributes {stable_mosaic.version = 11 : i64} {
  func.func @_proto_head_kernel(%arg0: i32, %arg1: i32, %arg2: memref<8x32xf32, #tpu.memory_space<vmem>>, %arg3: memref<8x1xf32, #tpu.memory_space<vmem>>, %arg4: memref<1x32x256xf32, #tpu.memory_space<vmem>>, %arg5: memref<1x8x256xf32, #tpu.memory_space<vmem>>) attributes {dimension_semantics = [#tpu.dimension_semantics<parallel>, #tpu.dimension_semantics<parallel>], iteration_bounds = array<i64: 2, 1>, scalar_prefetch = 0 : i64, scratch_operands = 0 : i64, tpu.core_type = #tpu.core_type<tc>, window_params = [{pipeline_mode = #tpu.pipeline_mode<synchronous>, transform_indices = @transform_0, window_bounds = array<i64: 8, 32>}, {pipeline_mode = #tpu.pipeline_mode<synchronous>, transform_indices = @transform_1, window_bounds = array<i64: 8, 1>}, {transform_indices = @transform_2, window_bounds = array<i64: 1, 32, 256>}, {transform_indices = @transform_3, window_bounds = array<i64: 1, 8, 256>}]} {
    %c0 = arith.constant 0 : index
    %c0_0 = arith.constant 0 : index
    %c0_1 = arith.constant 0 : index
    %0 = vector.load %arg4[%c0, %c0_0, %c0_1] : memref<1x32x256xf32, #tpu.memory_space<vmem>>, vector<1x32x256xf32>
    %1 = vector.shape_cast %0 : vector<1x32x256xf32> to vector<32x256xf32>
    %c0_2 = arith.constant 0 : index
    %c0_3 = arith.constant 0 : index
    %2 = vector.load %arg2[%c0_2, %c0_3] : memref<8x32xf32, #tpu.memory_space<vmem>>, vector<8x32xf32>
    %cst = arith.constant dense<0.000000e+00> : vector<8x256xf32>
    %3 = tpu.matmul %2, %1, %cst {dimension_numbers = #tpu.dot_dimension_numbers<[1], [0], [0], [1], [0, 0, 1, 1], [], []>} : vector<8x32xf32>, vector<32x256xf32>, vector<8x256xf32> -> vector<8x256xf32>
    %4 = arith.mulf %1, %1 : vector<32x256xf32>
    %cst_4 = arith.constant dense<0.000000e+00> : vector<256xf32>
    %5 = vector.multi_reduction <add>, %4, %cst_4 [0] : vector<32x256xf32> to vector<256xf32>
    %6 = vector.shape_cast %5 : vector<256xf32> to vector<1x256xf32>
    %c0_5 = arith.constant 0 : index
    %c0_6 = arith.constant 0 : index
    %7 = vector.load %arg3[%c0_5, %c0_6] : memref<8x1xf32, #tpu.memory_space<vmem>>, vector<8x1xf32>
    %8 = vector.broadcast %7 : vector<8x1xf32> to vector<8x256xf32>
    %9 = vector.broadcast %6 : vector<1x256xf32> to vector<8x256xf32>
    %10 = arith.addf %8, %9 : vector<8x256xf32>
    %cst_7 = arith.constant 2.000000e+00 : f32
    %11 = vector.broadcast %cst_7 : f32 to vector<8x256xf32>
    %12 = arith.mulf %11, %3 : vector<8x256xf32>
    %13 = arith.subf %10, %12 : vector<8x256xf32>
    %cst_8 = arith.constant 0.000000e+00 : f32
    %14 = vector.broadcast %cst_8 : f32 to vector<8x256xf32>
    %15 = arith.maximumf %13, %14 : vector<8x256xf32>
    %16 = math.sqrt %15 : vector<8x256xf32>
    %cst_9 = arith.constant 0.000000e+00 : f32
    %17 = vector.broadcast %cst_9 : f32 to vector<8x256xf32>
    %18 = arith.subf %17, %16 : vector<8x256xf32>
    %c0_10 = arith.constant 0 : index
    %c0_11 = arith.constant 0 : index
    %c0_12 = arith.constant 0 : index
    %19 = vector.load %arg5[%c0_10, %c0_11, %c0_12] : memref<1x8x256xf32, #tpu.memory_space<vmem>>, vector<1x8x256xf32>
    %20 = vector.shape_cast %19 : vector<1x8x256xf32> to vector<8x256xf32>
    %21 = vector.shape_cast %18 : vector<8x256xf32> to vector<1x8x256xf32>
    tpu.vector_store %arg5[%c0_10, %c0_11, %c0_12], %21 {strides = array<i32>} : memref<1x8x256xf32, #tpu.memory_space<vmem>>, vector<1x8x256xf32>,
    return
  }
  func.func @transform_0(%arg0: i32, %arg1: i32) -> (i32, i32) {
    %c0_i32 = arith.constant 0 : i32
    %c0_i32_0 = arith.constant 0 : i32
    %c0_i32_1 = arith.constant 0 : i32
    return %c0_i32, %c0_i32_0 : i32, i32
  }
  func.func @transform_1(%arg0: i32, %arg1: i32) -> (i32, i32) {
    %c0_i32 = arith.constant 0 : i32
    %c0_i32_0 = arith.constant 0 : i32
    %c0_i32_1 = arith.constant 0 : i32
    return %c0_i32, %c0_i32_0 : i32, i32
  }
  func.func @transform_2(%arg0: i32, %arg1: i32) -> (i32, i32, i32) {
    %c0_i32 = arith.constant 0 : i32
    %c0_i32_0 = arith.constant 0 : i32
    return %arg0, %c0_i32, %arg1 : i32, i32, i32
  }
  func.func @transform_3(%arg0: i32, %arg1: i32) -> (i32, i32, i32) {
    %c0_i32 = arith.constant 0 : i32
    %c0_i32_0 = arith.constant 0 : i32
    return %arg0, %c0_i32, %arg1 : i32, i32, i32
  }
}

</mosaic_0001>

<llo_original>
// kernel: tpu_custom_call.1
$region0: #{tpu_custom_call.1}
  #allocation0 [shape = 'u32[]', space=smem, size = 0x4, offset = 0x4, fixed_abs, tag = 'smem constant byte address 0x4 - core index']
  #allocation1 [shape = 'u32[144,128]{1,0:T(1,128)}', space=vmem, size = 0x12000, scoped, tag = 'internal scratch']
  %s0 = inlined_call_operand.vmem [shape: f32[8,32], index: 0, kind: input, shape index: {}]
  %s1 = inlined_call_operand.vmem [shape: f32[8,1], index: 1, kind: input, shape index: {}]
  %s2 = inlined_call_operand.hbm [shape: f32[2,32,256], index: 2, kind: input, shape index: {}]
  %s3 = inlined_call_operand.hbm [shape: f32[2,8,256], index: 3, kind: output, shape index: {}]
  %s4 = sld [smem:[#allocation0]]
  $region49: #{tpu_custom_call.1} parent=0
    _
  %s6 = ssub.s32 1, %s4
  %s7 = scalar_select 0, %s6, %s4
  $region1: #{tpu_custom_call.1} parent=0
    #allocation2 [shape = 'u8[65536]{0}', space=vmem, size = 0x10000, scoped, tag = 'input window, operand 2']
    #allocation3 [shape = 's32[2]{0}', space=sflag, size = 0x8, scoped, tag = 'scoped memory for tpu_custom_call.1']
    #allocation4 [shape = 's32[2]{0}', space=sflag, size = 0x8, scoped, tag = 'scoped memory for tpu_custom_call.1']
    #allocation5 [shape = 'u8[16384]{0}', space=vmem, size = 0x4000, scoped, tag = 'output window, operand 0']
    %8 = vsyncpa [#allocation3], 0
    %s9 = scalar_lea.sflag [#allocation3], 1
    %10 = vsyncpa %s9, 0
    %11 = vsyncpa [#allocation4], 0
    %s12 = scalar_lea.sflag [#allocation4], 1
    %13 = vsyncpa %s12, 0
    loop: start=0, step=1, limit=4
    $region2: #{tpu_custom_call.1} parent=1 // loop_pre_header
      _
    $region3: #{tpu_custom_call.1} parent=1 // loop_header
      %s15 = sphi 0, %s19
      %p16 = scmp.ge.s32.totalorder %s15, 4
      %s22 = sphi 0, %s34
      %s23 = sphi 0, %s30
      %s24 = sphi 0, %s22
      %s25 = sphi 0, %s23
      %s26 = sphi 0, %s24
      %s27 = sphi 0, %s25
      %s35 = sphi 0, %s35
      %s37 = sphi 0, %s35
      %s38 = sphi 0, %s37
      %s52 = sphi 0, %s38
      %s56 = sphi 0, %s56
      %s58 = sphi 0, %s56
      %s59 = sphi 0, %s58
      %s73 = sphi 0, %s59
      %s81 = sphi 0, %s83
      %s84 = sphi 0, %s81
      %s85 = sphi 0, %s84
      %s101 = sphi 0, %s85
      %s109 = sphi 0, %s111
      %s112 = sphi 0, %s109
      %s113 = sphi 0, %s112
      %s129 = sphi 0, %s113
    $region4: #{tpu_custom_call.1} parent=1 // loop_header_branch
      %18 = sbr.rel (%p16) target = $region8
    $region5: #{tpu_custom_call.1} parent=1 // loop_body
      %s20 = ssub.s32 %s15, 1
      %s21 = ssub.s32 %s15, 2
      %s28 = sadd.s32 1, %s23
      %p29 = scmp.ge.s32.totalorder %s28, 1
      %s30 = scalar_select %p29, 0, %s28
      %s31 = sadd.s32 1, %s22
      %s32 = scalar_select %p29, %s31, %s22
      %p33 = scmp.ge.s32.totalorder %s32, 2
      %s34 = scalar_select %p33, 0, %s32
      %s36 = sadd.s32 %s35, 1
      %p39 = scmp.eq.s32.totalorder %s15, 1
      %p40 = scmp.ne.s32.totalorder %s35, %s37
      %p41 = scmp.eq.s32.totalorder %s15, 0
      %p42 = por %p40, %p41
      %p43 = scmp.ne.s32.totalorder %s35, %s37
      %p44 = scmp.eq.s32.totalorder %s20, 1
      %p45 = por %p43, %p44
      %p46 = scmp.ne.s32.totalorder %s37, %s38
      %p47 = scmp.eq.s32.totalorder %s20, 0
      %p48 = por %p46, %p47
      %p49 = scmp.ne.s32.totalorder %s37, %s38
      %p50 = scmp.eq.s32.totalorder %s21, 1
      %p51 = por %p49, %p50
      %p53 = scmp.ne.s32.totalorder %s38, %s52
      %p54 = scmp.eq.s32.totalorder %s21, 0
      %p55 = por %p53, %p54
      %s57 = sadd.s32 %s56, 1
      %p60 = scmp.eq.s32.totalorder %s15, 1
      %p61 = scmp.ne.s32.totalorder %s56, %s58
      %p62 = scmp.eq.s32.totalorder %s15, 0
      %p63 = por %p61, %p62
      %p64 = scmp.ne.s32.totalorder %s56, %s58
      %p65 = scmp.eq.s32.totalorder %s20, 1
      %p66 = por %p64, %p65
      %p67 = scmp.ne.s32.totalorder %s58, %s59
      %p68 = scmp.eq.s32.totalorder %s20, 0
      %p69 = por %p67, %p68
      %p70 = scmp.ne.s32.totalorder %s58, %s59
      %p71 = scmp.eq.s32.totalorder %s21, 1
      %p72 = por %p70, %p71
      %p74 = scmp.ne.s32.totalorder %s59, %s73
      %p75 = scmp.eq.s32.totalorder %s21, 0
      %p76 = por %p74, %p75
      %s77 = ssub.s32 %s22, %s34
      %s78 = ssub.s32 %s23, %s30
      %s79 = sor.u32 %s77, %s78
      %p80 = scmp.eq.s32.totalorder %s79, 0
      %s82 = sadd.s32 %s81, 1
      %s83 = scalar_select %p80, %s81, %s82
      %p86 = pneg %p80
      %p87 = scmp.eq.s32.totalorder %s15, 1
      %p88 = por %p86, %p87
      %p89 = scmp.ne.s32.totalorder %s81, %s84
      %p90 = scmp.eq.s32.totalorder %s15, 0
      %p91 = por %p89, %p90
      %p92 = scmp.ne.s32.totalorder %s81, %s84
      %p93 = scmp.eq.s32.totalorder %s20, 1
      %p94 = por %p92, %p93
      %p95 = scmp.ne.s32.totalorder %s84, %s85
      %p96 = scmp.eq.s32.totalorder %s20, 0
      %p97 = por %p95, %p96
      %p98 = scmp.ne.s32.totalorder %s84, %s85
      %p99 = scmp.eq.s32.totalorder %s21, 1
      %p100 = por %p98, %p99
      %p102 = scmp.ne.s32.totalorder %s85, %s101
      %p103 = scmp.eq.s32.totalorder %s21, 0
      %p104 = por %p102, %p103
      %s105 = ssub.s32 %s22, %s34
      %s106 = ssub.s32 %s23, %s30
      %s107 = sor.u32 %s105, %s106
      %p108 = scmp.eq.s32.totalorder %s107, 0
      %s110 = sadd.s32 %s109, 1
      %s111 = scalar_select %p108, %s109, %s110
      %p114 = pneg %p108
      %p115 = scmp.eq.s32.totalorder %s15, 1
      %p116 = por %p114, %p115
      %p117 = scmp.ne.s32.totalorder %s109, %s112
      %p118 = scmp.eq.s32.totalorder %s15, 0
      %p119 = por %p117, %p118
      %p120 = scmp.ne.s32.totalorder %s109, %s112
      %p121 = scmp.eq.s32.totalorder %s20, 1
      %p122 = por %p120, %p121
      %p123 = scmp.ne.s32.totalorder %s112, %s113
      %p124 = scmp.eq.s32.totalorder %s20, 0
      %p125 = por %p123, %p124
      %p126 = scmp.ne.s32.totalorder %s112, %s113
      %p127 = scmp.eq.s32.totalorder %s21, 1
      %p128 = por %p126, %p127
      %p130 = scmp.ne.s32.totalorder %s113, %s129
      %p131 = scmp.eq.s32.totalorder %s21, 0
      %p132 = por %p130, %p131
      %p133 = scmp.le.s32.totalorder 1, %s15
      %p134 = scmp.lt.s32.totalorder %s15, 3
      %p135 = pnand %p133, %p134
      %p136 = pneg %p135
      // Predicated region
      $region9: #{tpu_custom_call.1} parent=5 // pred_check
        _
      $region10: #{tpu_custom_call.1} parent=5 // pred_check_branch
        %138 = sbr.rel (%p135) target = $region12
      $region11: #{tpu_custom_call.1} parent=5 // pred_region
        %s139 = ssub.s32 %s15, 1
        // Predicated region
        $region13: #{tpu_custom_call.1} parent=11 // pred_check
          %p140 = pneg %p48
        $region14: #{tpu_custom_call.1} parent=11 // pred_check_branch
          %142 = sbr.rel (%p140) target = $region16
        $region15: #{tpu_custom_call.1} parent=11 // pred_region
          _
        $region16: #{tpu_custom_call.1} parent=11 // pred_fallthru
          _
        // Predicated region
        $region17: #{tpu_custom_call.1} parent=11 // pred_check
          %p143 = pneg %p69
        $region18: #{tpu_custom_call.1} parent=11 // pred_check_branch
          %145 = sbr.rel (%p143) target = $region20
        $region19: #{tpu_custom_call.1} parent=11 // pred_region
          _
        $region20: #{tpu_custom_call.1} parent=11 // pred_fallthru
          _
      $region12: #{tpu_custom_call.1} parent=5 // pred_fallthru
        _
      %p146 = scmp.lt.s32.totalorder %s15, 2
      // Predicated region
      $region21: #{tpu_custom_call.1} parent=5 // pred_check
        %p147 = pneg %p146
      $region22: #{tpu_custom_call.1} parent=5 // pred_check_branch
        %149 = sbr.rel (%p147) target = $region24
      $region23: #{tpu_custom_call.1} parent=5 // pred_region
        // Predicated region
        $region25: #{tpu_custom_call.1} parent=23 // pred_check
          %p150 = pneg %p91
        $region26: #{tpu_custom_call.1} parent=23 // pred_check_branch
          %152 = sbr.rel (%p150) target = $region28
        $region27: #{tpu_custom_call.1} parent=23 // pred_region
          %s153 = sand.u32 %s81, 1
          %s154 = scalar_lea.sflag [#allocation3], %s153
          %s155 = sand.u32 %s81, 1
          %s156 = smul.addr %s155, 64
          %s157 = scalar_lea.vmem [#allocation2], %s156
          %s158 = smul.u32 2, %s23
          %s160 = ssub.s32 1024, 1024
          %161 = vsyncadd %s154, %s160
          %s162 = smul.addr %s22, 8
          %s163 = sadd.s32 %s158, %s162
          %s164 = smul.addr %s163, 128
          %s165 = scalar_lea.hbm %s2, %s164
          %s166 = sshll.u32 %s157, 4
          %s167 = int_to_ptr.vmem [resolvable:$true] %s166
          %172 = dma.hbm_to_vmem [thread:$0]  %s165, 1024, %s167, %s154, 256, 256, 16
        $region28: #{tpu_custom_call.1} parent=23 // pred_fallthru
          _
      $region24: #{tpu_custom_call.1} parent=5 // pred_fallthru
        _
      %p173 = scmp.le.s32.totalorder 1, %s15
      %p174 = scmp.lt.s32.totalorder %s15, 3
      %p175 = pnand %p173, %p174
      %p176 = pneg %p175
      // Predicated region
      $region29: #{tpu_custom_call.1} parent=5 // pred_check
        _
      $region30: #{tpu_custom_call.1} parent=5 // pred_check_branch
        %178 = sbr.rel (%p175) target = $region32
      $region31: #{tpu_custom_call.1} parent=5 // pred_region
        %s179 = ssub.s32 %s15, 1
        %s180 = sand.u32 %s84, 1
        %s181 = scalar_lea.sflag [#allocation3], %s180
        %s182 = sand.u32 %s84, 1
        %s183 = smul.addr %s182, 64
        %s184 = scalar_lea.vmem [#allocation2], %s183
        // Predicated region
        $region33: #{tpu_custom_call.1} parent=31 // pred_check
          %p185 = pneg %p97
        $region34: #{tpu_custom_call.1} parent=31 // pred_check_branch
          %187 = sbr.rel (%p185) target = $region36
        $region35: #{tpu_custom_call.1} parent=31 // pred_region
          %188 = dma.done %s181, 1024
        $region36: #{tpu_custom_call.1} parent=31 // pred_fallthru
          _
        %p189 = pneg %p48
        %p190 = pneg %p45
        %p191 = pneg %p69
        %p192 = pneg %p66
        %s193 = sand.u32 %s84, 1
        %s194 = scalar_lea.sflag [#allocation3], %s193
        %s195 = sand.u32 %s84, 1
        %s196 = smul.addr %s195, 64
        %s197 = scalar_lea.vmem [#allocation2], %s196
        %p198 = pneg %p97
        %p199 = pneg %p94
        %p200 = pneg %p125
        %p201 = pneg %p122
        %s202 = sand.u32 %s112, 1
        %s203 = scalar_lea.sflag [#allocation4], %s202
        %s204 = sand.u32 %s112, 1
        %s205 = smul.addr %s204, 16
        %s206 = scalar_lea.vmem [#allocation5], %s205
        %s207 = smul.u32 2, %s25
        %s208 = smul.u32 2, %s25
        %v209 = vld [vmem:[%s184] sm:$0xff]
        %v210 = vld [vmem:[%s184 + $0x8] sm:$0xff]
        %v211 = vld [vmem:[%s184 + $0x10] sm:$0xff]
        %v212 = vld [vmem:[%s184 + $0x18] sm:$0xff]
        %v213 = vld [vmem:[%s184 + $0x20] sm:$0xff]
        %v214 = vld [vmem:[%s184 + $0x28] sm:$0xff]
        %v215 = vld [vmem:[%s184 + $0x30] sm:$0xff]
        %v216 = vld [vmem:[%s184 + $0x38] sm:$0xff]
        %v217 = vld [vmem:[%s0] sm:$0xff]
        %vm218 = vcmask 261120
        %v220 = vsel %vm218, %v217, 0
        %222 = vmatprep.subr.mxu0 0.0
        %223 = vmatpush1.msra.mxu0 0.0
        %224 = vmatprep.subr.mxu0 0.0
        %225 = vmatpush1.msra.mxu0 0.0
        %226 = vmatprep.subr.mxu0 0.0
        %227 = vmatpush1.msra.mxu0 0.0
        %228 = vmatprep.subr.mxu0 0.0
        %229 = vmatpush1.msra.mxu0 0.0
        %230 = vmatprep.subr.mxu0 0.0
        %231 = vmatpush1.msra.mxu0 0.0
        %232 = vmatprep.subr.mxu0 0.0
        %233 = vmatpush1.msra.mxu0 0.0
        %234 = vmatprep.subr.mxu0 0.0
        %235 = vmatpush1.msra.mxu0 0.0
        %236 = vmatprep.subr.mxu0 0.0
        %237 = vmatpush1.msra.mxu0 0.0
        %238 = vmatprep.subr.mxu0 0.0
        %239 = vmatpush1.msra.mxu0 0.0
        %240 = vmatprep.subr.mxu0 0.0
        %241 = vmatpush1.msra.mxu0 0.0
        %242 = vmatprep.subr.mxu0 0.0
        %243 = vmatpush1.msra.mxu0 0.0
        %244 = vmatprep.subr.mxu0 0.0
        %245 = vmatpush1.msra.mxu0 0.0
        %246 = vmatprep.subr.mxu0 %v216
        %247 = vmatpush1.msra.mxu0 %v215
        %248 = vmatprep.subr.mxu0 %v214
        %249 = vmatpush1.msra.mxu0 %v213
        %250 = vmatprep.subr.mxu0 %v212
        %251 = vmatpush1.msra.mxu0 %v211
        %252 = vmatprep.subr.mxu0 %v210
        %253 = vmatpush1.msra.mxu0 %v209
        %254 = vmatprep.subr.mxu0 0.0
        %255 = vmatpush2.msra.mxu0 0.0
        %256 = vmatprep.subr.mxu0 0.0
        %257 = vmatpush2.msra.mxu0 0.0
        %258 = vmatprep.subr.mxu0 0.0
        %259 = vmatpush2.msra.mxu0 0.0
        %260 = vmatprep.subr.mxu0 0.0
        %261 = vmatpush2.msra.mxu0 0.0
        %262 = vmatprep.subr.mxu0 0.0
        %263 = vmatpush2.msra.mxu0 0.0
        %264 = vmatprep.subr.mxu0 0.0
        %265 = vmatpush2.msra.mxu0 0.0
        %266 = vmatprep.subr.mxu0 0.0
        %267 = vmatpush2.msra.mxu0 0.0
        %268 = vmatprep.subr.mxu0 0.0
        %269 = vmatpush2.msra.mxu0 0.0
        %270 = vmatprep.subr.mxu0 0.0
        %271 = vmatpush2.msra.mxu0 0.0
        %272 = vmatprep.subr.mxu0 0.0
        %273 = vmatpush2.msra.mxu0 0.0
        %274 = vmatprep.subr.mxu0 0.0
        %275 = vmatpush2.msra.mxu0 0.0
        %276 = vmatprep.subr.mxu0 0.0
        %277 = vmatpush2.msra.mxu0 0.0
        %278 = vmatprep.subr.mxu0 0.0
        %279 = vmatpush2.msra.mxu0 0.0
        %280 = vmatprep.subr.mxu0 0.0
        %281 = vmatpush2.msra.mxu0 0.0
        %282 = vmatprep.subr.mxu0 0.0
        %283 = vmatpush2.msra.mxu0 0.0
        %284 = vmatprep.subr.mxu0 0.0
        %285 = vmatpush2.msra.mxu0 0.0
        %286 = vmatprep.mubr.f32.mxu0 0.0
        %287 = vmatmul.mubr.f32.gmra.mxu0 %v220
        %v288 = vpop.f32.mrf.mxu0
        %v289 = vadd.f32 0.0, %v288
        %v290 = vpop.f32.mrf.mxu0
        %v291 = vadd.f32 0.0, %v290
        %292 = vdwg.mxu0
        %v293 = vmul.f32 %v209, %v209
        %v294 = vmul.f32 %v210, %v210
        %v295 = vmul.f32 %v211, %v211
        %v296 = vmul.f32 %v212, %v212
        %v297 = vmul.f32 %v213, %v213
        %v298 = vmul.f32 %v214, %v214
        %v299 = vmul.f32 %v215, %v215
        %v300 = vmul.f32 %v216, %v216
        %v301 = vadd.f32 %v293, %v295
        %v302 = vadd.f32 %v301, %v297
        %v303 = vadd.f32 %v302, %v299
        %v304 = vrot.slane %v303, 4
        %v305 = vadd.f32 %v303, %v304
        %v306 = vrot.slane %v305, 2
        %v307 = vadd.f32 %v305, %v306
        %v308 = vrot.slane %v307, 1
        %v309 = vadd.f32 %v307, %v308
        %v310 = vadd.f32 %v294, %v296
        %v311 = vadd.f32 %v310, %v298
        %v312 = vadd.f32 %v311, %v300
        %v313 = vrot.slane %v312, 4
        %v314 = vadd.f32 %v312, %v313
        %v315 = vrot.slane %v314, 2
        %v316 = vadd.f32 %v314, %v315
        %v317 = vrot.slane %v316, 1
        %v318 = vadd.f32 %v316, %v317
        %v319 = vld [vmem:[%s1] sm:$0xff]
        %321 = vset.pattern.permute.xlu0 0
        %322 = vperm.xlu0 %321, %v319
        %v323 = vpop.permute.xlu0 %322
        %v325 = vadd.f32 %v323, %v309
        %v326 = vadd.f32 %v323, %v318
        %v327 = vmul.f32 %v289, 2.0
        %v328 = vmul.f32 %v291, 2.0
        %v329 = vsub.f32 %v325, %v327
        %v330 = vsub.f32 %v326, %v328
        %v331 = vmax.f32 %v329, 0.0
        %v332 = vmax.f32 %v330, 0.0
        %v333 = vrsqrt.pop %v331
        %v334 = vmul.f32 %v331, %v333
        %vm335 = vcmp.eq.f32.partialorder %v331, inf
        %v336 = vsel %vm335, %v331, %v334
        %vm337 = vcmp.eq.f32.partialorder %v331, 0.0
        %v338 = vand.u32 %v331, 2147483648
        %v339 = vsel %vm337, %v338, %v336
        %v340 = vrsqrt.pop %v332
        %v341 = vmul.f32 %v332, %v340
        %vm342 = vcmp.eq.f32.partialorder %v332, inf
        %v343 = vsel %vm342, %v332, %v341
        %vm344 = vcmp.eq.f32.partialorder %v332, 0.0
        %v345 = vand.u32 %v332, 2147483648
        %v346 = vsel %vm344, %v345, %v343
        %v347 = vsub.f32 0.0, %v339
        %v348 = vsub.f32 0.0, %v346
        %349 = vst [vmem:[%s206] sm:$0xff] %v347
        %350 = vst [vmem:[%s206 + $0x8] sm:$0xff] %v348
        %s351 = sand.u32 %s112, 1
        %s352 = scalar_lea.sflag [#allocation4], %s351
        %s353 = sand.u32 %s112, 1
        %s354 = smul.addr %s353, 16
        %s355 = scalar_lea.vmem [#allocation5], %s354
        // Predicated region
        $region37: #{tpu_custom_call.1} parent=31 // pred_check
          %p356 = pneg %p122
        $region38: #{tpu_custom_call.1} parent=31 // pred_check_branch
          %358 = sbr.rel (%p356) target = $region40
        $region39: #{tpu_custom_call.1} parent=31 // pred_region
          %s359 = smul.u32 2, %s25
          %s361 = ssub.s32 256, 256
          %362 = vsyncadd %s352, %s361
          %s363 = smul.addr %s24, 2
          %s364 = sadd.s32 %s359, %s363
          %s365 = smul.addr %s364, 128
          %s366 = scalar_lea.hbm %s3, %s365
          %s368 = sshll.u32 %s355, 4
          %s369 = int_to_ptr.vmem [resolvable:$true] %s368
          %371 = dma.vmem_to_hbm [thread:$0]  %s369, 256, %s366, %s352
        $region40: #{tpu_custom_call.1} parent=31 // pred_fallthru
          _
      $region32: #{tpu_custom_call.1} parent=5 // pred_fallthru
        _
      %p372 = scmp.le.s32.totalorder 2, %s15
      // Predicated region
      $region41: #{tpu_custom_call.1} parent=5 // pred_check
        %p373 = pneg %p372
      $region42: #{tpu_custom_call.1} parent=5 // pred_check_branch
        %375 = sbr.rel (%p373) target = $region44
      $region43: #{tpu_custom_call.1} parent=5 // pred_region
        %s376 = ssub.s32 %s15, 2
        // Predicated region
        $region45: #{tpu_custom_call.1} parent=43 // pred_check
          %p377 = pneg %p128
        $region46: #{tpu_custom_call.1} parent=43 // pred_check_branch
          %379 = sbr.rel (%p377) target = $region48
        $region47: #{tpu_custom_call.1} parent=43 // pred_region
          %s380 = sand.u32 %s113, 1
          %s381 = scalar_lea.sflag [#allocation4], %s380
          %s382 = sand.u32 %s113, 1
          %s383 = smul.addr %s382, 16
          %s384 = scalar_lea.vmem [#allocation5], %s383
          %385 = dma.done %s381, 256
        $region48: #{tpu_custom_call.1} parent=43 // pred_fallthru
          _
      $region44: #{tpu_custom_call.1} parent=5 // pred_fallthru
        _
    $region6: #{tpu_custom_call.1} parent=1 // loop_footer
      %s19 = sadd.s32 1, %s15
    $region7: #{tpu_custom_call.1} parent=1 // loop_footer_branch
      %14 = sbr.rel target = $region3
    $region8: #{tpu_custom_call.1} parent=1 // loop_exit
      _
    %386 = vsyncpa [#allocation3], 1
    %s387 = scalar_lea.sflag [#allocation3], 1
    %388 = vsyncpa %s387, 1
    %389 = vsyncpa [#allocation4], 1
    %s390 = scalar_lea.sflag [#allocation4], 1
    %391 = vsyncpa %s390, 1

</llo_original>
